<compile_context>
chip_gen: v7x
topology: tpu7x:2x2x1
jax: 0.10.0
libtpu: 0.0.40
codegen_flags: <defaults>
</compile_context>

<pallas_src>
import functools

import jax
import jax.numpy as jnp
from jax.experimental import pallas as pl
from jax.experimental.pallas import tpu as pltpu

GAMMA = 0.2  # module default


def _round_up(x, m):
    return (x + m - 1) // m * m


def _gcod_kernel(logits_ref, labels_ref, out_ref, *, gamma, batch, block_rows):
    """One batch tile -> lane-dense partial sum of weight * cross_entropy."""
    i = pl.program_id(0)

    x = logits_ref[...].astype(jnp.float32)              # (TB, C)
    lab = labels_ref[...]                                 # (TB, 1) int32
    tb, c = x.shape

    # numerically-stable log-softmax pieces (all reductions are per-row, so
    # garbage rows of a ragged last tile never contaminate valid rows)
    m = jnp.max(x, axis=1, keepdims=True)                 # (TB, 1)
    shifted = x - m                                        # (TB, C)
    e = jnp.exp(shifted)                                   # single exp pass

    col = jax.lax.broadcasted_iota(jnp.int32, (tb, c), dimension=1)
    onehot = col == lab

    sumexp = jnp.sum(e, axis=1, keepdims=True)             # (TB, 1)
    true_shift = jnp.sum(jnp.where(onehot, shifted, 0.0), axis=1, keepdims=True)

    lse = jnp.log(sumexp)                                   # (TB, 1)
    ce = lse - true_shift                                    # per-sample CE
    log_p = true_shift - lse                                 # log softmax_true <= 0
    weight = jnp.exp(gamma * log_p)                          # true_prob ** gamma

    # mask batch-padding / ragged-tail rows BEFORE the reduction (mask-before-
    # reduce: garbage rows only appear in the unselected branch of the where)
    row = jax.lax.broadcasted_iota(jnp.int32, (tb, 1), dimension=0)
    valid = (i * block_rows + row) < batch
    partial_sum = jnp.sum(jnp.where(valid, weight * ce, 0.0))

    # lane-dense (1, 1, 128) partial-sum tile -> unmasked vst; summed in wrapper
    out_ref[...] = partial_sum * jnp.ones((1, 1, 128), jnp.float32)


def gcod_loss(logits, labels, gamma=GAMMA, block_rows=None):
    """logits: (B, C) float (f32 or bf16), labels: (B,) int -> scalar float32."""
    B, C = logits.shape
    dtype = logits.dtype
    itemsize = jnp.dtype(dtype).itemsize
    sub = 16 if itemsize == 2 else 8                       # sublane multiple

    # physical VMEM footprint of one row (lanes pad to 128 inside VMEM only;
    # no HBM-side padding is performed)
    lanes = _round_up(C, 128)
    per_row = lanes * itemsize

    # device-aware VMEM capacity (v5e/v6e: 128 MiB, v7x: 64 MiB per TC)
    vmem_cap = 64 * 1024 * 1024
    try:
        info = pltpu.get_tpu_info()
        vmem_cap = int(getattr(info, "vmem_capacity_bytes", vmem_cap))
    except Exception:
        pass

    # per-buffer byte budget: ~1/8 of VMEM, clamped to [2 MiB, 16 MiB]
    buf_budget = min(16 * 1024 * 1024, max(2 * 1024 * 1024, vmem_cap // 8))

    if block_rows is None:
        block_rows = max(sub, buf_budget // per_row)
    TB = max(sub, (int(block_rows) // sub) * sub)

    # keep double-buffered logits tiles under ~1/2 of VMEM
    max_rows_fit = max(sub, (((vmem_cap // 2) // (2 * per_row)) // sub) * sub)
    TB = min(TB, max_rows_fit)

    if B <= sub:
        TB = B                                             # full-extent first dim (legal)
    else:
        TB = min(TB, _round_up(B, sub))
        if pl.cdiv(B, TB) == 1:
            # keep >= 2 blocks so the "parallel" axis can span both v7x cores
            TB = max(sub, _round_up(pl.cdiv(B, 2), sub))

    num_blocks = pl.cdiv(B, TB)
    labels2d = labels.astype(jnp.int32).reshape(B, 1)

    blk_bytes = TB * per_row
    need = 2 * blk_bytes + 2 * TB * 4 + 4 * 128 * 4 + (1 << 20)
    vmem_limit = int(min(max(need, 32 * 1024 * 1024), (vmem_cap * 3) // 4))

    cost = pl.CostEstimate(
        flops=6 * B * C,
        transcendentals=B * C + 2 * B,
        bytes_accessed=B * C * itemsize + B * 4 + num_blocks * 128 * 4,
    )

    kernel = functools.partial(
        _gcod_kernel, gamma=float(gamma), batch=B, block_rows=TB)

    partials = pl.pallas_call(
        kernel,
        out_shape=jax.ShapeDtypeStruct((num_blocks, 1, 128), jnp.float32),
        grid=(num_blocks,),
        in_specs=[
            pl.BlockSpec((TB, C), lambda i: (i, 0)),       # full class extent, no pad
            pl.BlockSpec((TB, 1), lambda i: (i, 0)),
        ],
        out_specs=pl.BlockSpec((1, 1, 128), lambda i: (i, 0, 0)),
        compiler_params=pltpu.CompilerParams(
            dimension_semantics=("parallel",),
            vmem_limit_bytes=vmem_limit,
        ),
        cost_estimate=cost,
    )(logits, labels2d)

    # TODO(synk): for extremely large class counts (a single (TB, C) row-tile
    # no longer fitting VMEM, e.g. C >= ~8M f32) add a C-axis grid with an
    # online (flash-style) running max / running sumexp; not needed here.
    return jnp.sum(partials[:, 0, 0]) / jnp.float32(B)


def _reference(logits, labels, gamma=GAMMA):
    # pure-JAX reference mirroring the PyTorch module (detach is a forward no-op)
    logits = logits.astype(jnp.float32)
    logp = jax.nn.log_softmax(logits, axis=1)
    ce = -jnp.take_along_axis(logp, labels[:, None], axis=1)[:, 0]
    true_probs = jnp.take_along_axis(jax.nn.softmax(logits, axis=1),
                                     labels[:, None], axis=1)[:, 0]
    return jnp.mean((true_probs ** gamma) * ce)


if __name__ == "__main__":
    key = jax.random.PRNGKey(0)
    k1, k2, k3, k4 = jax.random.split(key, 4)

    # primary small test: batch=8, classes=32 (C not a multiple of 128; no pad)
    B, C = 8, 32
    logits = jax.random.normal(k1, (B, C), dtype=jnp.float32)
    labels = jax.random.randint(k2, (B,), 0, C, dtype=jnp.int32)
    loss = gcod_loss(logits, labels)
    jax.block_until_ready(loss)
    ref = _reference(logits, labels)
    assert jnp.allclose(loss, ref, atol=1e-5, rtol=1e-5), (loss, ref)

    # odd shapes exercise the ragged batch tile (>=2 blocks) + non-128 classes
    B2, C2 = 10, 100
    logits2 = jax.random.normal(k3, (B2, C2), dtype=jnp.float32)
    labels2 = jax.random.randint(k4, (B2,), 0, C2, dtype=jnp.int32)
    loss2 = gcod_loss(logits2, labels2)
    jax.block_until_ready(loss2)
    ref2 = _reference(logits2, labels2)
    assert jnp.allclose(loss2, ref2, atol=1e-5, rtol=1e-5), (loss2, ref2)

    # bf16 input path: kernel upcasts in-register; reference sees same bf16 data
    logits3 = logits.astype(jnp.bfloat16)
    loss3 = gcod_loss(logits3, labels)
    jax.block_until_ready(loss3)
    ref3 = _reference(logits3, labels)
    assert jnp.allclose(loss3, ref3, atol=1e-4, rtol=1e-4), (loss3, ref3)

    print("KERNEL_OK")
</pallas_src>

<mosaic_0001>
module attributes {stable_mosaic.version = 11 : i64} {
  func.func @_gcod_kernel(%arg0: i32, %arg1: memref<8x32xf32, #tpu.memory_space<vmem>>, %arg2: memref<8x1xi32, #tpu.memory_space<vmem>>, %arg3: memref<1x1x128xf32, #tpu.memory_space<vmem>>) attributes {dimension_semantics = [#tpu.dimension_semantics<parallel>], iteration_bounds = array<i64: 1>, scalar_prefetch = 0 : i64, scratch_operands = 0 : i64, tpu.core_type = #tpu.core_type<tc>, window_params = [{transform_indices = @transform_0, window_bounds = array<i64: 8, 32>}, {transform_indices = @transform_1, window_bounds = array<i64: 8, 1>}, {transform_indices = @transform_2, window_bounds = array<i64: 1, 1, 128>}]} {
    %c0 = arith.constant 0 : index
    %c0_0 = arith.constant 0 : index
    %0 = vector.load %arg1[%c0, %c0_0] : memref<8x32xf32, #tpu.memory_space<vmem>>, vector<8x32xf32>
    %c0_1 = arith.constant 0 : index
    %c0_2 = arith.constant 0 : index
    %1 = vector.load %arg2[%c0_1, %c0_2] : memref<8x1xi32, #tpu.memory_space<vmem>>, vector<8x1xi32>
    %cst = arith.constant dense<0xFF800000> : vector<8xf32>
    %2 = vector.multi_reduction <maximumf>, %0, %cst [1] : vector<8x32xf32> to vector<8xf32>
    %3 = vector.shape_cast %2 : vector<8xf32> to vector<8x1xf32>
    %4 = vector.broadcast %3 : vector<8x1xf32> to vector<8x32xf32>
    %5 = arith.subf %0, %4 : vector<8x32xf32>
    %6 = math.exp %5 : vector<8x32xf32>
    %7 = tpu.iota {dimensions = array<i32: 1>} : vector<8x32xi32>
    %8 = vector.broadcast %1 : vector<8x1xi32> to vector<8x32xi32>
    %9 = arith.cmpi eq, %7, %8 : vector<8x32xi32>
    %cst_3 = arith.constant dense<0.000000e+00> : vector<8xf32>
    %10 = vector.multi_reduction <add>, %6, %cst_3 [1] : vector<8x32xf32> to vector<8xf32>
    %11 = vector.shape_cast %10 : vector<8xf32> to vector<8x1xf32>
    %cst_4 = arith.constant 0.000000e+00 : f32
    %12 = vector.broadcast %cst_4 : f32 to vector<8x32xf32>
    %13 = arith.select %9, %5, %12 : vector<8x32xi1>, vector<8x32xf32>
    %cst_5 = arith.constant dense<0.000000e+00> : vector<8xf32>
    %14 = vector.multi_reduction <add>, %13, %cst_5 [1] : vector<8x32xf32> to vector<8xf32>
    %15 = vector.shape_cast %14 : vector<8xf32> to vector<8x1xf32>
    %16 = math.log %11 : vector<8x1xf32>
    %17 = arith.subf %16, %15 : vector<8x1xf32>
    %18 = arith.subf %15, %16 : vector<8x1xf32>
    %cst_6 = arith.constant 2.000000e-01 : f32
    %19 = vector.broadcast %cst_6 : f32 to vector<8x1xf32>
    %20 = arith.mulf %19, %18 : vector<8x1xf32>
    %21 = math.exp %20 : vector<8x1xf32>
    %22 = tpu.iota {dimensions = array<i32: 0>} : vector<8x1xi32>
    %c8_i32 = arith.constant 8 : i32
    %23 = arith.muli %arg0, %c8_i32 : i32
    %24 = vector.broadcast %23 : i32 to vector<8x1xi32>
    %25 = arith.addi %24, %22 : vector<8x1xi32>
    %c8_i32_7 = arith.constant 8 : i32
    %26 = vector.broadcast %c8_i32_7 : i32 to vector<8x1xi32>
    %27 = arith.cmpi slt, %25, %26 : vector<8x1xi32>
    %28 = arith.mulf %21, %17 : vector<8x1xf32>
    %cst_8 = arith.constant 0.000000e+00 : f32
    %29 = vector.broadcast %cst_8 : f32 to vector<8x1xf32>
    %30 = arith.select %27, %28, %29 : vector<8x1xi1>, vector<8x1xf32>
    %31 = vector.shape_cast %30 : vector<8x1xf32> to vector<1x8x1xf32>
    %cst_9 = arith.constant dense<0.000000e+00> : vector<1xf32>
    %32 = vector.multi_reduction <add>, %31, %cst_9 [1, 2] : vector<1x8x1xf32> to vector<1xf32>
    %33 = vector.shape_cast %32 : vector<1xf32> to vector<1x1x1xf32>
    %34 = vector.extract %33[0, 0, 0] : f32 from vector<1x1x1xf32>
    %cst_10 = arith.constant 1.000000e+00 : f32
    %35 = vector.broadcast %cst_10 : f32 to vector<1x1x128xf32>
    %36 = vector.broadcast %34 : f32 to vector<1x1x128xf32>
    %37 = arith.mulf %36, %35 : vector<1x1x128xf32>
    %c0_11 = arith.constant 0 : index
    %c0_12 = arith.constant 0 : index
    %c0_13 = arith.constant 0 : index
    %38 = vector.load %arg3[%c0_11, %c0_12, %c0_13] : memref<1x1x128xf32, #tpu.memory_space<vmem>>, vector<1x1x128xf32>
    tpu.vector_store %arg3[%c0_11, %c0_12, %c0_13], %37 {strides = array<i32>} : memref<1x1x128xf32, #tpu.memory_space<vmem>>, vector<1x1x128xf32>,
    return
  }
  func.func @transform_0(%arg0: i32) -> (i32, i32) {
    %c0_i32 = arith.constant 0 : i32
    %c0_i32_0 = arith.constant 0 : i32
    return %arg0, %c0_i32 : i32, i32
  }
  func.func @transform_1(%arg0: i32) -> (i32, i32) {
    %c0_i32 = arith.constant 0 : i32
    %c0_i32_0 = arith.constant 0 : i32
    return %arg0, %c0_i32 : i32, i32
  }
  func.func @transform_2(%arg0: i32) -> (i32, i32, i32) {
    %c0_i32 = arith.constant 0 : i32
    %c0_i32_0 = arith.constant 0 : i32
    %c0_i32_1 = arith.constant 0 : i32
    return %arg0, %c0_i32, %c0_i32_0 : i32, i32, i32
  }
}

</mosaic_0001>

<llo_original>
// kernel: tpu_custom_call.1
$region0: #{tpu_custom_call.1}
  #allocation0 [shape = 'u32[]', space=smem, size = 0x4, offset = 0x4, fixed_abs, tag = 'smem constant byte address 0x4 - core index']
  #allocation1 [shape = 'u32[144,128]{1,0:T(1,128)}', space=vmem, size = 0x12000, scoped, tag = 'internal scratch']
  %s0 = inlined_call_operand.vmem [shape: f32[8,32], index: 0, kind: input, shape index: {}]
  %s1 = inlined_call_operand.vmem [shape: s32[8,1], index: 1, kind: input, shape index: {}]
  %s2 = inlined_call_operand.hbm [shape: f32[1,1,128], index: 2, kind: output, shape index: {}]
  %s3 = sld [smem:[#allocation0]]
  $region18: #{tpu_custom_call.1} parent=0
    _
  %s5 = ssub.s32 1, %s3
  %s6 = scalar_select 0, %s5, %s3
  $region1: #{tpu_custom_call.1} parent=0
    #allocation2 [shape = 'u8[512]{0}', space=vmem, size = 0x400, scoped, tag = 'output window, operand 0, single buffered']
    #allocation3 [shape = 's32[1]{0}', space=sflag, size = 0x4, scoped, tag = 'scoped memory for tpu_custom_call.1']
    %7 = vsyncpa [#allocation3], 0
    // Predicated region
    $region2: #{tpu_custom_call.1} parent=1 // pred_check
      _
    $region3: #{tpu_custom_call.1} parent=1 // pred_check_branch
      %9 = sbr.rel (0) target = $region5
    $region4: #{tpu_custom_call.1} parent=1 // pred_region
      _
    $region5: #{tpu_custom_call.1} parent=1 // pred_fallthru
      _
    // Predicated region
    $region6: #{tpu_custom_call.1} parent=1 // pred_check
      _
    $region7: #{tpu_custom_call.1} parent=1 // pred_check_branch
      %11 = sbr.rel (0) target = $region9
    $region8: #{tpu_custom_call.1} parent=1 // pred_region
      _
    $region9: #{tpu_custom_call.1} parent=1 // pred_fallthru
      _
    %v12 = vld [vmem:[%s0] sm:$0xff]
    %v13 = vld [vmem:[%s1] sm:$0xff]
    %vm14 = vcmask 261120
    %v15 = vsel %vm14, %v12, -inf
    %16 = vmax.xlane.f32.xlu0 %v15
    %v17 = vpop.xlane.xlu0 %16
    %v18 = vsub.f32 %v12, %v17
    %v19 = vmul.f32 %v18, 1.442695
    %v20 = vpow.pop %v19
    %v21 = vlaneseq
    %v22 = vand.u32 %v21, 127
    %23 = vset.pattern.permute.xlu0 0
    %24 = vperm.xlu0 %23, %v13
    %v25 = vpop.permute.xlu0 %24
    %vm26 = vcmp.eq.s32.totalorder %v22, %v25
    %v27 = vsel %vm14, %v20, 0.0
    %28 = vadd.xlane.f32.xlu0 %v27
    %v29 = vpop.xlane.xlu0 %28
    %v30 = vsel %vm26, %v18, 0.0
    %v31 = vsel %vm14, %v30, 0.0
    %32 = vadd.xlane.f32.xlu0 %v31
    %v33 = vpop.xlane.xlu0 %32
    %v34 = vlog2.pop %v29
    %v35 = vmul.f32 %v34, 0.6931472
    %v36 = vsub.f32 %v35, %v33
    %v37 = vsub.f32 %v33, %v35
    %v38 = vmul.f32 %v37, 0.2
    %v39 = vmul.f32 %v38, 1.442695
    %v40 = vpow.pop %v39
    %v41 = vlaneseq
    %v42 = vshrl.u32 %v41, 7
    %s43 = smul.u32 0, 8
    %v44 = vstv %s43
    %v45 = vadd.s32 %v44, %v42
    %vm46 = vcmp.lt.s32.totalorder %v45, 8
    %v47 = vmul.f32 %v40, %v36
    %v48 = vsel %vm46, %v47, 0.0
    %vm49 = vcmask 7168
    %v50 = vsel %vm49, %v48, 0.0
    %51 = vadd.xlane.f32.xlu0 %v50
    %v52 = vpop.xlane.xlu0 %51
    %v53 = vrot.slane %v52, 4
    %v54 = vadd.f32 %v52, %v53
    %v55 = vrot.slane %v54, 2
    %v56 = vadd.f32 %v54, %v55
    %v57 = vrot.slane %v56, 1
    %v58 = vadd.f32 %v56, %v57
    %s59 = vtos %v58
    %v60 = vstv %s59
    %61 = vst [vmem:[#allocation2] sm:$0x1] %v60
    // Predicated region
    $region10: #{tpu_custom_call.1} parent=1 // pred_check
      _
    $region11: #{tpu_custom_call.1} parent=1 // pred_check_branch
      %63 = sbr.rel (0) target = $region13
    $region12: #{tpu_custom_call.1} parent=1 // pred_region
      %s65 = ssub.s32 16, 16
      %66 = vsyncadd [#allocation3], %s65
      %s68 = sshll.u32 [#allocation2], 4
      %s69 = int_to_ptr.vmem [resolvable:$true] %s68
      %71 = dma.vmem_to_hbm [thread:$0]  %s69, 16, %s2, [#allocation3]
    $region13: #{tpu_custom_call.1} parent=1 // pred_fallthru
      _
    // Predicated region
    $region14: #{tpu_custom_call.1} parent=1 // pred_check
      _
    $region15: #{tpu_custom_call.1} parent=1 // pred_check_branch
      %73 = sbr.rel (0) target = $region17
    $region16: #{tpu_custom_call.1} parent=1 // pred_region
      %74 = dma.done [#allocation3], 16
    $region17: #{tpu_custom_call.1} parent=1 // pred_fallthru
      _
    %75 = vsyncpa [#allocation3], 1

</llo_original>
